<compile_context>
chip_gen: v7x
topology: tpu7x:2x2x1
jax: 0.10.0
libtpu: 0.0.40
codegen_flags: <defaults>
</compile_context>

<pallas_src>
import jax
import jax.numpy as jnp
from jax import lax
from jax.experimental import pallas as pl
from jax.experimental.pallas import tpu as pltpu


# ----------------------------------------------------------------------------
# Packed-slab row layout (shared by pack_params and the forward wrapper so the
# wrapper can stay jit-friendly: offsets are derived from static shapes only).
# ----------------------------------------------------------------------------
def _round8(n):
    return -(-n // 8) * 8


def _row_layout(feat1, emb, P):
    sizes = (
        _round8(feat1),  # W1   (feat1, emb)           : x1 @ W1
        _round8(emb),    # W2a  (emb,  hid)            : x0 @ W2a
        _round8(P),      # W2b  (emb->P rows, hid)     : relu(fc1) @ W2b
        _round8(P),      # W3   (hid->P, hid->P)
        _round8(P),      # W4   (hid->P, hid->P)
        8,               # vec rows: b1, b2, b3, b4, (b_out, 0..), out-weight row
    )
    offs, o = [], 0
    for n in sizes:
        offs.append(o)
        o += n
    return tuple(offs), o


# ----------------------------------------------------------------------------
# Pallas kernel factory: full critic forward on one (TB, .) batch tile.
# Operands:
#   x0_ref  : (TB, emb)
#   x1_ref  : (TB, emb*srm)
#   w_ref   : (R, P)   single packed weight/bias slab (see pack_params)
#   out_ref : (1, TB)  lane-dense output tile (f32)
# ----------------------------------------------------------------------------
def _make_kernel(feat1, emb, P, offs):
    o1, o2a, o2b, o3, o4, ov = offs
    f32 = jnp.float32

    def kernel(x0_ref, x1_ref, w_ref, out_ref):
        dt = x0_ref.dtype
        relu = lambda v: jnp.maximum(v, 0.0)

        b1 = w_ref[ov + 0:ov + 1, :].astype(f32)    # (1, P), zero beyond emb
        b2 = w_ref[ov + 1:ov + 2, :].astype(f32)    # (1, P), zero beyond hid
        b3 = w_ref[ov + 2:ov + 3, :].astype(f32)
        b4 = w_ref[ov + 3:ov + 4, :].astype(f32)
        bo = w_ref[ov + 4:ov + 5, 0:1].astype(f32)  # (1, 1) out-layer bias
        wo = w_ref[ov + 5:ov + 6, :]                # (1, P) out-layer weight row

        # s = relu(fc1(x1)); padded cols (>= emb) stay exactly 0.
        s = relu(jnp.dot(x1_ref[...], w_ref[o1:o1 + feat1, :],
                         preferred_element_type=f32) + b1)

        # s = relu(fc2(cat([x0, s], 1))) == relu(x0 @ W2a + s @ W2b + b2)
        s = relu(
            jnp.dot(x0_ref[...], w_ref[o2a:o2a + emb, :],
                    preferred_element_type=f32)
            + jnp.dot(s.astype(dt), w_ref[o2b:o2b + P, :],
                      preferred_element_type=f32)
            + b2
        )

        # s = relu(fc3(s)); s = relu(fc4(s))
        s = relu(jnp.dot(s.astype(dt), w_ref[o3:o3 + P, :],
                         preferred_element_type=f32) + b3)
        s = relu(jnp.dot(s.astype(dt), w_ref[o4:o4 + P, :],
                         preferred_element_type=f32) + b4)

        # out layer, lane-dense: wo (1,P) contracted with s (TB,P) -> (1,TB),
        # so stores are full-width vst instead of masked (TB,1) stores.
        out_ref[...] = (
            lax.dot_general(
                wo, s.astype(dt),
                dimension_numbers=(((1,), (1,)), ((), ())),
                preferred_element_type=f32,
            )
            + bo
        )

    return kernel


# ----------------------------------------------------------------------------
# One-time parameter layout prep (keep OUT of the per-step hot path).
# Input `params` is torch-style: "<layer>_w" as (out, in), "<layer>_b" as (out,).
# Everything lands in one (R, P) slab; zero padding is mathematically inert
# (zero weight cols -> zero activation cols -> zero downstream contributions).
# ----------------------------------------------------------------------------
def pack_params(params, dtype=jnp.bfloat16):
    emb = params["fc1_w"].shape[0]
    hid = params["fc3_w"].shape[0]
    feat1 = params["fc1_w"].shape[1]
    P = max(emb, hid)
    offs, total_rows = _row_layout(feat1, emb, P)
    o1, o2a, o2b, o3, o4, ov = offs

    slab = jnp.zeros((total_rows, P), jnp.float32)

    def put(s, r, block):
        block = jnp.asarray(block, jnp.float32)
        return s.at[r:r + block.shape[0], :block.shape[1]].set(block)

    w2t = params["fc2_w"].T                       # (2*emb, hid)
    slab = put(slab, o1, params["fc1_w"].T)       # (feat1, emb)
    slab = put(slab, o2a, w2t[:emb, :])           # (emb, hid)  acts on x0
    slab = put(slab, o2b, w2t[emb:, :])           # (emb, hid)  acts on relu(fc1)
    slab = put(slab, o3, params["fc3_w"].T)       # (hid, hid)
    slab = put(slab, o4, params["fc4_w"].T)       # (hid, hid)
    slab = put(slab, ov + 0, params["fc1_b"][None, :])
    slab = put(slab, ov + 1, params["fc2_b"][None, :])
    slab = put(slab, ov + 2, params["fc3_b"][None, :])
    slab = put(slab, ov + 3, params["fc4_b"][None, :])
    slab = put(slab, ov + 4, params["out_b"][None, :])
    slab = put(slab, ov + 5, params["out_w"][0][None, :])

    return {"slab": slab.astype(dtype)}


# ----------------------------------------------------------------------------
# Forward wrapper: batch-tiled pallas_call.
# ----------------------------------------------------------------------------
def critic_forward(x0, x1, packed):
    """x0: (B, emb), x1: (B, emb*srm), packed = pack_params(...) -> (B, 1)."""
    slab = packed["slab"]
    B, emb = x0.shape
    feat1 = x1.shape[1]
    P = slab.shape[1]
    offs, _ = _row_layout(feat1, emb, P)
    dt = slab.dtype

    # bf16 (default) activations halve HBM bytes on the x0/x1 stream -- the
    # roofline-binding term at large B -- and feed the MXU its native
    # single-pass input dtype.  Accumulation stays f32 inside the kernel.
    x0 = x0.astype(dt)
    x1 = x1.astype(dt)

    # Batch-tile selection:
    #  * small B: one tile (launch + prologue-DMA overhead dominates anyway)
    #  * larger B: >=2 grid steps so "parallel" shards across v7x's two
    #    TensorCores; tile a multiple of 128 so the lane-dense (1, TB) output
    #    block stays legal; MAX_TB=4096 amortizes the ~0.35us/step overhead
    #    while double-buffered bf16 tiles stay far below even v5e's 16 MiB
    #    scoped-VMEM default.
    MAX_TB = 4096
    if B <= 256:
        TB = B
    else:
        TB = min(MAX_TB, ((pl.cdiv(B, 2) + 127) // 128) * 128)
    grid = (pl.cdiv(B, TB),)

    kernel = _make_kernel(feat1, emb, P, offs)

    el = slab.dtype.itemsize
    flops = 2 * B * (feat1 * P + emb * P + 3 * P * P + P)
    bytes_accessed = B * (emb + feat1) * el + slab.size * el + B * 4

    out = pl.pallas_call(
        kernel,
        out_shape=jax.ShapeDtypeStruct((1, B), jnp.float32),
        grid=grid,
        in_specs=[
            pl.BlockSpec((TB, emb), lambda i: (i, 0)),      # x0 batch tile
            pl.BlockSpec((TB, feat1), lambda i: (i, 0)),    # x1 batch tile
            # Whole weight slab, grid-invariant (one prologue DMA).  Tiny at
            # these sizes, so default double-buffering is harmless; if hidden
            # dims ever scale up, switch to pipeline_mode=pl.Buffered(1) or a
            # K grid axis instead of keeping it fully resident.
            pl.BlockSpec(slab.shape, lambda i: (0, 0)),
        ],
        out_specs=pl.BlockSpec((1, TB), lambda i: (0, i)),  # lane-dense output
        compiler_params=pltpu.CompilerParams(
            dimension_semantics=("parallel",)),
        cost_estimate=pl.CostEstimate(
            flops=flops, transcendentals=0, bytes_accessed=bytes_accessed),
    )(x0, x1, slab)

    # TODO(synk): for the tiny-B serving regime (B~8), amortize across calls
    # (batch several critic evaluations per pallas_call / keep the slab
    # resident across calls) -- per-call launch + prologue DMA dominates there.

    # Back to the module's (B, 1) shape; B*4 bytes, negligible.
    return out.reshape(B, 1)


# ----------------------------------------------------------------------------
# Deterministic init matching the module's initialize():
#   weights: nn.init.kaiming_uniform_ with default a=0 -> bound = sqrt(6/fan_in)
#   biases : untouched by initialize() -> nn.Linear default U(-1/sqrt(fan_in), .)
# ----------------------------------------------------------------------------
def init_params(key, embedding_dim, srm_size, hidden_dim):
    def kaiming_uniform(k, out_f, in_f):
        bound = jnp.sqrt(6.0 / in_f)
        return jax.random.uniform(k, (out_f, in_f), jnp.float32, -bound, bound)

    def bias_init(k, out_f, in_f):
        bound = 1.0 / jnp.sqrt(in_f)
        return jax.random.uniform(k, (out_f,), jnp.float32, -bound, bound)

    ks = jax.random.split(key, 10)
    dims = [
        ("fc1", embedding_dim, embedding_dim * srm_size),
        ("fc2", hidden_dim, embedding_dim * 2),
        ("fc3", hidden_dim, hidden_dim),
        ("fc4", hidden_dim, hidden_dim),
        ("out", 1, hidden_dim),
    ]
    params = {}
    for i, (name, out_f, in_f) in enumerate(dims):
        params[f"{name}_w"] = kaiming_uniform(ks[2 * i], out_f, in_f)
        params[f"{name}_b"] = bias_init(ks[2 * i + 1], out_f, in_f)
    return params


# Pure-JAX reference (torch-style params) for verification.
def critic_reference(x0, x1, params):
    relu = lambda v: jnp.maximum(v, 0.0)
    s = relu(x1 @ params["fc1_w"].T + params["fc1_b"])
    s = jnp.concatenate([x0, s], axis=1)
    s = relu(s @ params["fc2_w"].T + params["fc2_b"])
    s = relu(s @ params["fc3_w"].T + params["fc3_b"])
    s = relu(s @ params["fc4_w"].T + params["fc4_b"])
    return s @ params["out_w"].T + params["out_b"]


if __name__ == "__main__":
    embedding_dim, srm_size, hidden_dim, batch = 32, 8, 32, 8

    key = jax.random.PRNGKey(0)
    k_params, k_x0, k_x1 = jax.random.split(key, 3)

    params = init_params(k_params, embedding_dim, srm_size, hidden_dim)

    # forward(x): x[0]: (B, emb), x[1]: (B, emb*srm)
    x0 = jax.random.normal(k_x0, (batch, embedding_dim), jnp.float32)
    x1 = jax.random.normal(k_x1, (batch, embedding_dim * srm_size), jnp.float32)
    ref = critic_reference(x0, x1, params)

    # f32 packing path: tight correctness check against the pure-JAX reference.
    packed_f32 = pack_params(params, dtype=jnp.float32)
    out_f32 = jax.block_until_ready(jax.jit(critic_forward)(x0, x1, packed_f32))
    assert out_f32.shape == (batch, 1), out_f32.shape
    err32 = float(jnp.max(jnp.abs(out_f32 - ref)))
    assert err32 < 1e-3, f"f32 max abs err {err32}"

    # bf16 packing path (default / production): relaxed tolerance vs f32 ref.
    packed_bf16 = pack_params(params, dtype=jnp.bfloat16)
    out_bf16 = jax.block_until_ready(jax.jit(critic_forward)(x0, x1, packed_bf16))
    assert out_bf16.shape == (batch, 1), out_bf16.shape
    err16 = float(jnp.max(jnp.abs(out_bf16 - ref)))
    assert err16 < 1.5e-1, f"bf16 max abs err {err16}"

    print("KERNEL_OK")
</pallas_src>

<mosaic_0001>
module attributes {stable_mosaic.version = 11 : i64} {
  func.func @kernel(%arg0: i32, %arg1: memref<8x32xf32, #tpu.memory_space<vmem>>, %arg2: memref<8x256xf32, #tpu.memory_space<vmem>>, %arg3: memref<392x32xf32, #tpu.memory_space<vmem>>, %arg4: memref<1x8xf32, #tpu.memory_space<vmem>>) attributes {dimension_semantics = [#tpu.dimension_semantics<parallel>], iteration_bounds = array<i64: 1>, scalar_prefetch = 0 : i64, scratch_operands = 0 : i64, tpu.core_type = #tpu.core_type<tc>, window_params = [{transform_indices = @transform_0, window_bounds = array<i64: 8, 32>}, {transform_indices = @transform_1, window_bounds = array<i64: 8, 256>}, {pipeline_mode = #tpu.pipeline_mode<synchronous>, transform_indices = @transform_2, window_bounds = array<i64: 392, 32>}, {transform_indices = @transform_3, window_bounds = array<i64: 1, 8>}]} {
    %c384 = arith.constant 384 : index
    %c0 = arith.constant 0 : index
    %0 = vector.load %arg3[%c384, %c0] : memref<392x32xf32, #tpu.memory_space<vmem>>, vector<1x32xf32>
    %c385 = arith.constant 385 : index
    %c0_0 = arith.constant 0 : index
    %1 = vector.load %arg3[%c385, %c0_0] : memref<392x32xf32, #tpu.memory_space<vmem>>, vector<1x32xf32>
    %c386 = arith.constant 386 : index
    %c0_1 = arith.constant 0 : index
    %2 = vector.load %arg3[%c386, %c0_1] : memref<392x32xf32, #tpu.memory_space<vmem>>, vector<1x32xf32>
    %c387 = arith.constant 387 : index
    %c0_2 = arith.constant 0 : index
    %3 = vector.load %arg3[%c387, %c0_2] : memref<392x32xf32, #tpu.memory_space<vmem>>, vector<1x32xf32>
    %c388 = arith.constant 388 : index
    %c0_3 = arith.constant 0 : index
    %4 = vector.load %arg3[%c388, %c0_3] : memref<392x32xf32, #tpu.memory_space<vmem>>, vector<1x1xf32>
    %c389 = arith.constant 389 : index
    %c0_4 = arith.constant 0 : index
    %5 = vector.load %arg3[%c389, %c0_4] : memref<392x32xf32, #tpu.memory_space<vmem>>, vector<1x32xf32>
    %c0_5 = arith.constant 0 : index
    %c0_6 = arith.constant 0 : index
    %6 = vector.load %arg2[%c0_5, %c0_6] : memref<8x256xf32, #tpu.memory_space<vmem>>, vector<8x256xf32>
    %c0_7 = arith.constant 0 : index
    %c0_8 = arith.constant 0 : index
    %7 = vector.load %arg3[%c0_7, %c0_8] : memref<392x32xf32, #tpu.memory_space<vmem>>, vector<256x32xf32>
    %cst = arith.constant dense<0.000000e+00> : vector<8x32xf32>
    %8 = tpu.matmul %6, %7, %cst {dimension_numbers = #tpu.dot_dimension_numbers<[1], [0], [0], [1], [0, 0, 1, 1], [], []>} : vector<8x256xf32>, vector<256x32xf32>, vector<8x32xf32> -> vector<8x32xf32>
    %9 = vector.broadcast %0 : vector<1x32xf32> to vector<8x32xf32>
    %10 = arith.addf %8, %9 : vector<8x32xf32>
    %cst_9 = arith.constant 0.000000e+00 : f32
    %11 = vector.broadcast %cst_9 : f32 to vector<8x32xf32>
    %12 = arith.maximumf %10, %11 : vector<8x32xf32>
    %c0_10 = arith.constant 0 : index
    %c0_11 = arith.constant 0 : index
    %13 = vector.load %arg1[%c0_10, %c0_11] : memref<8x32xf32, #tpu.memory_space<vmem>>, vector<8x32xf32>
    %c256 = arith.constant 256 : index
    %c0_12 = arith.constant 0 : index
    %14 = vector.load %arg3[%c256, %c0_12] : memref<392x32xf32, #tpu.memory_space<vmem>>, vector<32x32xf32>
    %cst_13 = arith.constant dense<0.000000e+00> : vector<8x32xf32>
    %15 = tpu.matmul %13, %14, %cst_13 {dimension_numbers = #tpu.dot_dimension_numbers<[1], [0], [0], [1], [0, 0, 1, 1], [], []>} : vector<8x32xf32>, vector<32x32xf32>, vector<8x32xf32> -> vector<8x32xf32>
    %c288 = arith.constant 288 : index
    %c0_14 = arith.constant 0 : index
    %16 = vector.load %arg3[%c288, %c0_14] : memref<392x32xf32, #tpu.memory_space<vmem>>, vector<32x32xf32>
    %cst_15 = arith.constant dense<0.000000e+00> : vector<8x32xf32>
    %17 = tpu.matmul %12, %16, %cst_15 {dimension_numbers = #tpu.dot_dimension_numbers<[1], [0], [0], [1], [0, 0, 1, 1], [], []>} : vector<8x32xf32>, vector<32x32xf32>, vector<8x32xf32> -> vector<8x32xf32>
    %18 = arith.addf %15, %17 : vector<8x32xf32>
    %19 = vector.broadcast %1 : vector<1x32xf32> to vector<8x32xf32>
    %20 = arith.addf %18, %19 : vector<8x32xf32>
    %cst_16 = arith.constant 0.000000e+00 : f32
    %21 = vector.broadcast %cst_16 : f32 to vector<8x32xf32>
    %22 = arith.maximumf %20, %21 : vector<8x32xf32>
    %c320 = arith.constant 320 : index
    %c0_17 = arith.constant 0 : index
    %23 = vector.load %arg3[%c320, %c0_17] : memref<392x32xf32, #tpu.memory_space<vmem>>, vector<32x32xf32>
    %cst_18 = arith.constant dense<0.000000e+00> : vector<8x32xf32>
    %24 = tpu.matmul %22, %23, %cst_18 {dimension_numbers = #tpu.dot_dimension_numbers<[1], [0], [0], [1], [0, 0, 1, 1], [], []>} : vector<8x32xf32>, vector<32x32xf32>, vector<8x32xf32> -> vector<8x32xf32>
    %25 = vector.broadcast %2 : vector<1x32xf32> to vector<8x32xf32>
    %26 = arith.addf %24, %25 : vector<8x32xf32>
    %cst_19 = arith.constant 0.000000e+00 : f32
    %27 = vector.broadcast %cst_19 : f32 to vector<8x32xf32>
    %28 = arith.maximumf %26, %27 : vector<8x32xf32>
    %c352 = arith.constant 352 : index
    %c0_20 = arith.constant 0 : index
    %29 = vector.load %arg3[%c352, %c0_20] : memref<392x32xf32, #tpu.memory_space<vmem>>, vector<32x32xf32>
    %cst_21 = arith.constant dense<0.000000e+00> : vector<8x32xf32>
    %30 = tpu.matmul %28, %29, %cst_21 {dimension_numbers = #tpu.dot_dimension_numbers<[1], [0], [0], [1], [0, 0, 1, 1], [], []>} : vector<8x32xf32>, vector<32x32xf32>, vector<8x32xf32> -> vector<8x32xf32>
    %31 = vector.broadcast %3 : vector<1x32xf32> to vector<8x32xf32>
    %32 = arith.addf %30, %31 : vector<8x32xf32>
    %cst_22 = arith.constant 0.000000e+00 : f32
    %33 = vector.broadcast %cst_22 : f32 to vector<8x32xf32>
    %34 = arith.maximumf %32, %33 : vector<8x32xf32>
    %cst_23 = arith.constant dense<0.000000e+00> : vector<1x8xf32>
    %35 = tpu.matmul %5, %34, %cst_23 {dimension_numbers = #tpu.dot_dimension_numbers<[1], [1], [0], [0], [0, 0, 1, 0], [], []>} : vector<1x32xf32>, vector<8x32xf32>, vector<1x8xf32> -> vector<1x8xf32>
    %36 = vector.broadcast %4 : vector<1x1xf32> to vector<1x8xf32>
    %37 = arith.addf %35, %36 : vector<1x8xf32>
    %c0_24 = arith.constant 0 : index
    %c0_25 = arith.constant 0 : index
    %38 = vector.load %arg4[%c0_24, %c0_25] : memref<1x8xf32, #tpu.memory_space<vmem>>, vector<1x8xf32>
    tpu.vector_store %arg4[%c0_24, %c0_25], %37 {strides = array<i32>} : memref<1x8xf32, #tpu.memory_space<vmem>>, vector<1x8xf32>,
    return
  }
  func.func @transform_0(%arg0: i32) -> (i32, i32) {
    %c0_i32 = arith.constant 0 : i32
    %c0_i32_0 = arith.constant 0 : i32
    return %arg0, %c0_i32 : i32, i32
  }
  func.func @transform_1(%arg0: i32) -> (i32, i32) {
    %c0_i32 = arith.constant 0 : i32
    %c0_i32_0 = arith.constant 0 : i32
    return %arg0, %c0_i32 : i32, i32
  }
  func.func @transform_2(%arg0: i32) -> (i32, i32) {
    %c0_i32 = arith.constant 0 : i32
    %c0_i32_0 = arith.constant 0 : i32
    %c0_i32_1 = arith.constant 0 : i32
    return %c0_i32, %c0_i32_0 : i32, i32
  }
  func.func @transform_3(%arg0: i32) -> (i32, i32) {
    %c0_i32 = arith.constant 0 : i32
    %c0_i32_0 = arith.constant 0 : i32
    return %c0_i32, %arg0 : i32, i32
  }
}

</mosaic_0001>

<llo_original>
// kernel: critic_forward.1
$region0: #{critic_forward.1}
  #allocation0 [shape = 'u32[]', space=smem, size = 0x4, offset = 0x4, fixed_abs, tag = 'smem constant byte address 0x4 - core index']
  #allocation1 [shape = 'u32[144,128]{1,0:T(1,128)}', space=vmem, size = 0x12000, scoped, tag = 'internal scratch']
  %s0 = inlined_call_operand.vmem [shape: f32[8,32], index: 0, kind: input, shape index: {}]
  %s1 = inlined_call_operand.vmem [shape: f32[8,256], index: 1, kind: input, shape index: {}]
  %s2 = inlined_call_operand.vmem [shape: f32[392,32], index: 2, kind: input, shape index: {}]
  %s3 = inlined_call_operand.hbm [shape: f32[1,8], index: 3, kind: output, shape index: {}]
  %s4 = sld [smem:[#allocation0]]
  $region22: #{critic_forward.1} parent=0
    _
  %s6 = ssub.s32 1, %s4
  %s7 = scalar_select 0, %s6, %s4
  $region1: #{critic_forward.1} parent=0
    #allocation2 [shape = 'u8[512]{0}', space=vmem, size = 0x400, scoped, tag = 'output window, operand 0, single buffered']
    #allocation3 [shape = 's32[1]{0}', space=sflag, size = 0x4, scoped, tag = 'scoped memory for critic_forward.1']
    %8 = vsyncpa [#allocation3], 0
    // Predicated region
    $region2: #{critic_forward.1} parent=1 // pred_check
      _
    $region3: #{critic_forward.1} parent=1 // pred_check_branch
      %10 = sbr.rel (0) target = $region5
    $region4: #{critic_forward.1} parent=1 // pred_region
      _
    $region5: #{critic_forward.1} parent=1 // pred_fallthru
      _
    // Predicated region
    $region6: #{critic_forward.1} parent=1 // pred_check
      _
    $region7: #{critic_forward.1} parent=1 // pred_check_branch
      %12 = sbr.rel (0) target = $region9
    $region8: #{critic_forward.1} parent=1 // pred_region
      _
    $region9: #{critic_forward.1} parent=1 // pred_fallthru
      _
    // Predicated region
    $region10: #{critic_forward.1} parent=1 // pred_check
      _
    $region11: #{critic_forward.1} parent=1 // pred_check_branch
      %14 = sbr.rel (0) target = $region13
    $region12: #{critic_forward.1} parent=1 // pred_region
      _
    $region13: #{critic_forward.1} parent=1 // pred_fallthru
      _
    %v15 = vld [vmem:[%s2 + $0x180] sm:$0x1]
    %v16 = vld [vmem:[%s2 + $0x181] sm:$0x1]
    %v17 = vld [vmem:[%s2 + $0x182] sm:$0x1]
    %v18 = vld [vmem:[%s2 + $0x183] sm:$0x1]
    %v19 = vld [vmem:[%s2 + $0x184] sm:$0x1]
    %v20 = vld [vmem:[%s2 + $0x185] sm:$0x1]
    %v21 = vld [vmem:[%s1] sm:$0xff]
    %v22 = vld [vmem:[%s1 + $0x8] sm:$0xff]
    %v23 = vld [vmem:[%s2] sm:$0xff]
    %v24 = vld [vmem:[%s2 + $0x8] sm:$0xff]
    %v25 = vld [vmem:[%s2 + $0x10] sm:$0xff]
    %v26 = vld [vmem:[%s2 + $0x18] sm:$0xff]
    %v27 = vld [vmem:[%s2 + $0x20] sm:$0xff]
    %v28 = vld [vmem:[%s2 + $0x28] sm:$0xff]
    %v29 = vld [vmem:[%s2 + $0x30] sm:$0xff]
    %v30 = vld [vmem:[%s2 + $0x38] sm:$0xff]
    %v31 = vld [vmem:[%s2 + $0x40] sm:$0xff]
    %v32 = vld [vmem:[%s2 + $0x48] sm:$0xff]
    %v33 = vld [vmem:[%s2 + $0x50] sm:$0xff]
    %v34 = vld [vmem:[%s2 + $0x58] sm:$0xff]
    %v35 = vld [vmem:[%s2 + $0x60] sm:$0xff]
    %v36 = vld [vmem:[%s2 + $0x68] sm:$0xff]
    %v37 = vld [vmem:[%s2 + $0x70] sm:$0xff]
    %v38 = vld [vmem:[%s2 + $0x78] sm:$0xff]
    %v39 = vld [vmem:[%s2 + $0x80] sm:$0xff]
    %v40 = vld [vmem:[%s2 + $0x88] sm:$0xff]
    %v41 = vld [vmem:[%s2 + $0x90] sm:$0xff]
    %v42 = vld [vmem:[%s2 + $0x98] sm:$0xff]
    %v43 = vld [vmem:[%s2 + $0xa0] sm:$0xff]
    %v44 = vld [vmem:[%s2 + $0xa8] sm:$0xff]
    %v45 = vld [vmem:[%s2 + $0xb0] sm:$0xff]
    %v46 = vld [vmem:[%s2 + $0xb8] sm:$0xff]
    %v47 = vld [vmem:[%s2 + $0xc0] sm:$0xff]
    %v48 = vld [vmem:[%s2 + $0xc8] sm:$0xff]
    %v49 = vld [vmem:[%s2 + $0xd0] sm:$0xff]
    %v50 = vld [vmem:[%s2 + $0xd8] sm:$0xff]
    %v51 = vld [vmem:[%s2 + $0xe0] sm:$0xff]
    %v52 = vld [vmem:[%s2 + $0xe8] sm:$0xff]
    %v53 = vld [vmem:[%s2 + $0xf0] sm:$0xff]
    %v54 = vld [vmem:[%s2 + $0xf8] sm:$0xff]
    %v55 = vlaneseq
    %v56 = vshrl.u32 %v55, 7
    %v57 = vsub.s32 0, %v56
    %v58 = vrot.slane %v15, %v57
    %59 = vmatprep.subr.mxu0 0.0
    %60 = vmatpush1.msra.mxu0 %v23
    %61 = vmatprep.subr.mxu0 0.0
    %62 = vmatpush1.msra.mxu0 %v24
    %63 = vmatprep.subr.mxu0 0.0
    %64 = vmatpush1.msra.mxu0 %v25
    %65 = vmatprep.subr.mxu0 0.0
    %66 = vmatpush1.msra.mxu0 %v26
    %67 = vmatprep.subr.mxu0 0.0
    %68 = vmatpush1.msra.mxu0 %v27
    %69 = vmatprep.subr.mxu0 0.0
    %70 = vmatpush1.msra.mxu0 %v28
    %71 = vmatprep.subr.mxu0 0.0
    %72 = vmatpush1.msra.mxu0 %v29
    %73 = vmatprep.subr.mxu0 0.0
    %74 = vmatpush1.msra.mxu0 %v30
    %75 = vmatprep.subr.mxu0 0.0
    %76 = vmatpush1.msra.mxu0 %v31
    %77 = vmatprep.subr.mxu0 0.0
    %78 = vmatpush1.msra.mxu0 %v32
    %79 = vmatprep.subr.mxu0 0.0
    %80 = vmatpush1.msra.mxu0 %v33
    %81 = vmatprep.subr.mxu0 0.0
    %82 = vmatpush1.msra.mxu0 %v34
    %83 = vmatprep.subr.mxu0 0.0
    %84 = vmatpush1.msra.mxu0 %v35
    %85 = vmatprep.subr.mxu0 0.0
    %86 = vmatpush1.msra.mxu0 %v36
    %87 = vmatprep.subr.mxu0 0.0
    %88 = vmatpush1.msra.mxu0 %v37
    %89 = vmatprep.subr.mxu0 0.0
    %90 = vmatpush1.msra.mxu0 %v38
    %91 = vmatprep.subr.mxu0 0.0
    %92 = vmatpush1.msra.mxu0 %v39
    %93 = vmatprep.subr.mxu0 0.0
    %94 = vmatpush1.msra.mxu0 %v40
    %95 = vmatprep.subr.mxu0 0.0
    %96 = vmatpush1.msra.mxu0 %v41
    %97 = vmatprep.subr.mxu0 0.0
    %98 = vmatpush1.msra.mxu0 %v42
    %99 = vmatprep.subr.mxu0 0.0
    %100 = vmatpush1.msra.mxu0 %v43
    %101 = vmatprep.subr.mxu0 0.0
    %102 = vmatpush1.msra.mxu0 %v44
    %103 = vmatprep.subr.mxu0 0.0
    %104 = vmatpush1.msra.mxu0 %v45
    %105 = vmatprep.subr.mxu0 0.0
    %106 = vmatpush1.msra.mxu0 %v46
    %107 = vmatprep.subr.mxu0 0.0
    %108 = vmatpush1.msra.mxu0 %v47
    %109 = vmatprep.subr.mxu0 0.0
    %110 = vmatpush1.msra.mxu0 %v48
    %111 = vmatprep.subr.mxu0 0.0
    %112 = vmatpush1.msra.mxu0 %v49
    %113 = vmatprep.subr.mxu0 0.0
    %114 = vmatpush1.msra.mxu0 %v50
    %115 = vmatprep.subr.mxu0 0.0
    %116 = vmatpush1.msra.mxu0 %v51
    %117 = vmatprep.subr.mxu0 0.0
    %118 = vmatpush1.msra.mxu0 %v52
    %119 = vmatprep.subr.mxu0 0.0
    %120 = vmatpush1.msra.mxu0 %v53
    %121 = vmatprep.subr.mxu0 0.0
    %122 = vmatpush1.msra.mxu0 %v54
    %123 = vmatprep.mubr.f32.mxu0 %v22
    %124 = vmatmul.mubr.f32.gmra.mrb[0].mxu0 %v21
    %v125 = vpop.f32.mrb[0].mxu0
    %v126 = vadd.f32 %v58, %v125
    %v127 = vpop.f32.mrb[0].mxu0
    %128 = vdwg.mxu0
    %v129 = vmax.f32 %v126, 0.0
    %v130 = vld [vmem:[%s0] sm:$0xff]
    %v131 = vld [vmem:[%s2 + $0x100] sm:$0xff]
    %v132 = vld [vmem:[%s2 + $0x108] sm:$0xff]
    %v133 = vld [vmem:[%s2 + $0x110] sm:$0xff]
    %v134 = vld [vmem:[%s2 + $0x118] sm:$0xff]
    %v135 = vld [vmem:[%s2 + $0x120] sm:$0xff]
    %v136 = vld [vmem:[%s2 + $0x128] sm:$0xff]
    %v137 = vld [vmem:[%s2 + $0x130] sm:$0xff]
    %v138 = vld [vmem:[%s2 + $0x138] sm:$0xff]
    %vm139 = vcmask 261120
    %v141 = vsel %vm139, %v129, 0
    %143 = vmatprep.subr.mxu0 0.0
    %144 = vmatpush1.msra.mxu0 %v135
    %145 = vmatprep.subr.mxu0 0.0
    %146 = vmatpush1.msra.mxu0 %v136
    %147 = vmatprep.subr.mxu0 0.0
    %148 = vmatpush1.msra.mxu0 %v137
    %149 = vmatprep.subr.mxu0 0.0
    %150 = vmatpush1.msra.mxu0 %v138
    %151 = vmatprep.subr.mxu0 0.0
    %152 = vmatpush1.msra.mxu0 0.0
    %153 = vmatprep.subr.mxu0 0.0
    %154 = vmatpush1.msra.mxu0 0.0
    %155 = vmatprep.subr.mxu0 0.0
    %156 = vmatpush1.msra.mxu0 0.0
    %157 = vmatprep.subr.mxu0 0.0
    %158 = vmatpush1.msra.mxu0 0.0
    %159 = vmatprep.subr.mxu0 0.0
    %160 = vmatpush1.msra.mxu0 0.0
    %161 = vmatprep.subr.mxu0 0.0
    %162 = vmatpush1.msra.mxu0 0.0
    %163 = vmatprep.subr.mxu0 0.0
    %164 = vmatpush1.msra.mxu0 0.0
    %165 = vmatprep.subr.mxu0 0.0
    %166 = vmatpush1.msra.mxu0 0.0
    %167 = vmatprep.subr.mxu0 0.0
    %168 = vmatpush1.msra.mxu0 0.0
    %169 = vmatprep.subr.mxu0 0.0
    %170 = vmatpush1.msra.mxu0 0.0
    %171 = vmatprep.subr.mxu0 0.0
    %172 = vmatpush1.msra.mxu0 0.0
    %173 = vmatprep.subr.mxu0 0.0
    %174 = vmatpush1.msra.mxu0 0.0
    %175 = vmatprep.subr.mxu0 0.0
    %176 = vmatpush1.msra.mxu0 0.0
    %177 = vmatprep.subr.mxu0 0.0
    %178 = vmatpush1.msra.mxu0 0.0
    %179 = vmatprep.subr.mxu0 0.0
    %180 = vmatpush1.msra.mxu0 0.0
    %181 = vmatprep.subr.mxu0 0.0
    %182 = vmatpush1.msra.mxu0 0.0
    %183 = vmatprep.subr.mxu0 0.0
    %184 = vmatpush1.msra.mxu0 0.0
    %185 = vmatprep.subr.mxu0 0.0
    %186 = vmatpush1.msra.mxu0 0.0
    %187 = vmatprep.subr.mxu0 0.0
    %188 = vmatpush1.msra.mxu0 0.0
    %189 = vmatprep.subr.mxu0 0.0
    %190 = vmatpush1.msra.mxu0 0.0
    %191 = vmatprep.subr.mxu0 0.0
    %192 = vmatpush1.msra.mxu0 0.0
    %193 = vmatprep.subr.mxu0 0.0
    %194 = vmatpush1.msra.mxu0 0.0
    %195 = vmatprep.subr.mxu0 0.0
    %196 = vmatpush1.msra.mxu0 0.0
    %197 = vmatprep.subr.mxu0 0.0
    %198 = vmatpush1.msra.mxu0 0.0
    %199 = vmatprep.subr.mxu0 0.0
    %200 = vmatpush1.msra.mxu0 0.0
    %201 = vmatprep.subr.mxu0 0.0
    %202 = vmatpush1.msra.mxu0 0.0
    %203 = vmatprep.subr.mxu0 0.0
    %204 = vmatpush1.msra.mxu0 0.0
    %205 = vmatprep.subr.mxu0 0.0
    %206 = vmatpush1.msra.mxu0 0.0
    %207 = vmatprep.mubr.f32.mxu0 0.0
    %208 = vmatmul.mubr.f32.gmra.mrb[0].mxu0 %v141
    %v209 = vpop.f32.mrb[0].mxu0
    %v210 = vadd.f32 0.0, %v209
    %v211 = vpop.f32.mrb[0].mxu0
    %212 = vdwg.mxu0
    %v214 = vsel %vm139, %v130, 0
    %216 = vmatprep.subr.mxu0 0.0
    %217 = vmatpush1.msra.mxu0 %v131
    %218 = vmatprep.subr.mxu0 0.0
    %219 = vmatpush1.msra.mxu0 %v132
    %220 = vmatprep.subr.mxu0 0.0
    %221 = vmatpush1.msra.mxu0 %v133
    %222 = vmatprep.subr.mxu0 0.0
    %223 = vmatpush1.msra.mxu0 %v134
    %224 = vmatprep.subr.mxu0 0.0
    %225 = vmatpush1.msra.mxu0 0.0
    %226 = vmatprep.subr.mxu0 0.0
    %227 = vmatpush1.msra.mxu0 0.0
    %228 = vmatprep.subr.mxu0 0.0
    %229 = vmatpush1.msra.mxu0 0.0
    %230 = vmatprep.subr.mxu0 0.0
    %231 = vmatpush1.msra.mxu0 0.0
    %232 = vmatprep.subr.mxu0 0.0
    %233 = vmatpush1.msra.mxu0 0.0
    %234 = vmatprep.subr.mxu0 0.0
    %235 = vmatpush1.msra.mxu0 0.0
    %236 = vmatprep.subr.mxu0 0.0
    %237 = vmatpush1.msra.mxu0 0.0
    %238 = vmatprep.subr.mxu0 0.0
    %239 = vmatpush1.msra.mxu0 0.0
    %240 = vmatprep.subr.mxu0 0.0
    %241 = vmatpush1.msra.mxu0 0.0
    %242 = vmatprep.subr.mxu0 0.0
    %243 = vmatpush1.msra.mxu0 0.0
    %244 = vmatprep.subr.mxu0 0.0
    %245 = vmatpush1.msra.mxu0 0.0
    %246 = vmatprep.subr.mxu0 0.0
    %247 = vmatpush1.msra.mxu0 0.0
    %248 = vmatprep.subr.mxu0 0.0
    %249 = vmatpush1.msra.mxu0 0.0
    %250 = vmatprep.subr.mxu0 0.0
    %251 = vmatpush1.msra.mxu0 0.0
    %252 = vmatprep.subr.mxu0 0.0
    %253 = vmatpush1.msra.mxu0 0.0
    %254 = vmatprep.subr.mxu0 0.0
    %255 = vmatpush1.msra.mxu0 0.0
    %256 = vmatprep.subr.mxu0 0.0
    %257 = vmatpush1.msra.mxu0 0.0
    %258 = vmatprep.subr.mxu0 0.0
    %259 = vmatpush1.msra.mxu0 0.0
    %260 = vmatprep.subr.mxu0 0.0
    %261 = vmatpush1.msra.mxu0 0.0
    %262 = vmatprep.subr.mxu0 0.0
    %263 = vmatpush1.msra.mxu0 0.0
    %264 = vmatprep.subr.mxu0 0.0
    %265 = vmatpush1.msra.mxu0 0.0
    %266 = vmatprep.subr.mxu0 0.0
    %267 = vmatpush1.msra.mxu0 0.0
    %268 = vmatprep.subr.mxu0 0.0
    %269 = vmatpush1.msra.mxu0 0.0
    %270 = vmatprep.subr.mxu0 0.0
    %271 = vmatpush1.msra.mxu0 0.0
    %272 = vmatprep.subr.mxu0 0.0
    %273 = vmatpush1.msra.mxu0 0.0
    %274 = vmatprep.subr.mxu0 0.0
    %275 = vmatpush1.msra.mxu0 0.0
    %276 = vmatprep.subr.mxu0 0.0
    %277 = vmatpush1.msra.mxu0 0.0
    %278 = vmatprep.subr.mxu0 0.0
    %279 = vmatpush1.msra.mxu0 0.0
    %280 = vmatprep.mubr.f32.mxu0 0.0
    %281 = vmatmul.mubr.f32.gmra.mrb[0].mxu0 %v214
    %v282 = vpop.f32.mrb[0].mxu0
    %v283 = vadd.f32 %v210, %v282
    %v284 = vpop.f32.mrb[0].mxu0
    %285 = vdwg.mxu0
    %v286 = vlaneseq
    %v287 = vshrl.u32 %v286, 7
    %v288 = vsub.s32 0, %v287
    %v289 = vrot.slane %v16, %v288
    %v290 = vadd.f32 %v283, %v289
    %v291 = vmax.f32 %v290, 0.0
    %v292 = vld [vmem:[%s2 + $0x140] sm:$0xff]
    %v293 = vld [vmem:[%s2 + $0x148] sm:$0xff]
    %v294 = vld [vmem:[%s2 + $0x150] sm:$0xff]
    %v295 = vld [vmem:[%s2 + $0x158] sm:$0xff]
    %v296 = vlaneseq
    %v297 = vshrl.u32 %v296, 7
    %v298 = vsub.s32 0, %v297
    %v299 = vrot.slane %v17, %v298
    %v301 = vsel %vm139, %v291, 0
    %303 = vmatprep.subr.mxu0 0.0
    %304 = vmatpush1.msra.mxu0 %v292
    %305 = vmatprep.subr.mxu0 0.0
    %306 = vmatpush1.msra.mxu0 %v293
    %307 = vmatprep.subr.mxu0 0.0
    %308 = vmatpush1.msra.mxu0 %v294
    %309 = vmatprep.subr.mxu0 0.0
    %310 = vmatpush1.msra.mxu0 %v295
    %311 = vmatprep.subr.mxu0 0.0
    %312 = vmatpush1.msra.mxu0 0.0
    %313 = vmatprep.subr.mxu0 0.0
    %314 = vmatpush1.msra.mxu0 0.0
    %315 = vmatprep.subr.mxu0 0.0
    %316 = vmatpush1.msra.mxu0 0.0
    %317 = vmatprep.subr.mxu0 0.0
    %318 = vmatpush1.msra.mxu0 0.0
    %319 = vmatprep.subr.mxu0 0.0
    %320 = vmatpush1.msra.mxu0 0.0
    %321 = vmatprep.subr.mxu0 0.0
    %322 = vmatpush1.msra.mxu0 0.0
    %323 = vmatprep.subr.mxu0 0.0
    %324 = vmatpush1.msra.mxu0 0.0
    %325 = vmatprep.subr.mxu0 0.0
    %326 = vmatpush1.msra.mxu0 0.0
    %327 = vmatprep.subr.mxu0 0.0
    %328 = vmatpush1.msra.mxu0 0.0
    %329 = vmatprep.subr.mxu0 0.0
    %330 = vmatpush1.msra.mxu0 0.0
    %331 = vmatprep.subr.mxu0 0.0
    %332 = vmatpush1.msra.mxu0 0.0
    %333 = vmatprep.subr.mxu0 0.0
    %334 = vmatpush1.msra.mxu0 0.0
    %335 = vmatprep.subr.mxu0 0.0
    %336 = vmatpush1.msra.mxu0 0.0
    %337 = vmatprep.subr.mxu0 0.0
    %338 = vmatpush1.msra.mxu0 0.0
    %339 = vmatprep.subr.mxu0 0.0
    %340 = vmatpush1.msra.mxu0 0.0
    %341 = vmatprep.subr.mxu0 0.0
    %342 = vmatpush1.msra.mxu0 0.0
    %343 = vmatprep.subr.mxu0 0.0
    %344 = vmatpush1.msra.mxu0 0.0
    %345 = vmatprep.subr.mxu0 0.0
    %346 = vmatpush1.msra.mxu0 0.0
    %347 = vmatprep.subr.mxu0 0.0
    %348 = vmatpush1.msra.mxu0 0.0
    %349 = vmatprep.subr.mxu0 0.0
    %350 = vmatpush1.msra.mxu0 0.0
    %351 = vmatprep.subr.mxu0 0.0
    %352 = vmatpush1.msra.mxu0 0.0
    %353 = vmatprep.subr.mxu0 0.0
    %354 = vmatpush1.msra.mxu0 0.0
    %355 = vmatprep.subr.mxu0 0.0
    %356 = vmatpush1.msra.mxu0 0.0
    %357 = vmatprep.subr.mxu0 0.0
    %358 = vmatpush1.msra.mxu0 0.0
    %359 = vmatprep.subr.mxu0 0.0
    %360 = vmatpush1.msra.mxu0 0.0
    %361 = vmatprep.subr.mxu0 0.0
    %362 = vmatpush1.msra.mxu0 0.0
    %363 = vmatprep.subr.mxu0 0.0
    %364 = vmatpush1.msra.mxu0 0.0
    %365 = vmatprep.subr.mxu0 0.0
    %366 = vmatpush1.msra.mxu0 0.0
    %367 = vmatprep.mubr.f32.mxu0 0.0
    %368 = vmatmul.mubr.f32.gmra.mrb[0].mxu0 %v301
    %v369 = vpop.f32.mrb[0].mxu0
    %v370 = vadd.f32 %v299, %v369
    %v371 = vpop.f32.mrb[0].mxu0
    %372 = vdwg.mxu0
    %v373 = vmax.f32 %v370, 0.0
    %v374 = vld [vmem:[%s2 + $0x160] sm:$0xff]
    %v375 = vld [vmem:[%s2 + $0x168] sm:$0xff]
    %v376 = vld [vmem:[%s2 + $0x170] sm:$0xff]
    %v377 = vld [vmem:[%s2 + $0x178] sm:$0xff]
    %v378 = vlaneseq
    %v379 = vshrl.u32 %v378, 7
    %v380 = vsub.s32 0, %v379
    %v381 = vrot.slane %v18, %v380
    %v383 = vsel %vm139, %v373, 0
    %385 = vmatprep.subr.mxu0 0.0
    %386 = vmatpush1.msra.mxu0 %v374
    %387 = vmatprep.subr.mxu0 0.0
    %388 = vmatpush1.msra.mxu0 %v375
    %389 = vmatprep.subr.mxu0 0.0
    %390 = vmatpush1.msra.mxu0 %v376
    %391 = vmatprep.subr.mxu0 0.0
    %392 = vmatpush1.msra.mxu0 %v377
    %393 = vmatprep.subr.mxu0 0.0
    %394 = vmatpush1.msra.mxu0 0.0
    %395 = vmatprep.subr.mxu0 0.0
    %396 = vmatpush1.msra.mxu0 0.0
    %397 = vmatprep.subr.mxu0 0.0
    %398 = vmatpush1.msra.mxu0 0.0
    %399 = vmatprep.subr.mxu0 0.0
    %400 = vmatpush1.msra.mxu0 0.0
    %401 = vmatprep.subr.mxu0 0.0
    %402 = vmatpush1.msra.mxu0 0.0
    %403 = vmatprep.subr.mxu0 0.0
    %404 = vmatpush1.msra.mxu0 0.0
    %405 = vmatprep.subr.mxu0 0.0
    %406 = vmatpush1.msra.mxu0 0.0
    %407 = vmatprep.subr.mxu0 0.0
    %408 = vmatpush1.msra.mxu0 0.0
    %409 = vmatprep.subr.mxu0 0.0
    %410 = vmatpush1.msra.mxu0 0.0
    %411 = vmatprep.subr.mxu0 0.0
    %412 = vmatpush1.msra.mxu0 0.0
    %413 = vmatprep.subr.mxu0 0.0
    %414 = vmatpush1.msra.mxu0 0.0
    %415 = vmatprep.subr.mxu0 0.0
    %416 = vmatpush1.msra.mxu0 0.0
    %417 = vmatprep.subr.mxu0 0.0
    %418 = vmatpush1.msra.mxu0 0.0
    %419 = vmatprep.subr.mxu0 0.0
    %420 = vmatpush1.msra.mxu0 0.0
    %421 = vmatprep.subr.mxu0 0.0
    %422 = vmatpush1.msra.mxu0 0.0
    %423 = vmatprep.subr.mxu0 0.0
    %424 = vmatpush1.msra.mxu0 0.0
    %425 = vmatprep.subr.mxu0 0.0
    %426 = vmatpush1.msra.mxu0 0.0
    %427 = vmatprep.subr.mxu0 0.0
    %428 = vmatpush1.msra.mxu0 0.0
    %429 = vmatprep.subr.mxu0 0.0
    %430 = vmatpush1.msra.mxu0 0.0
    %431 = vmatprep.subr.mxu0 0.0
    %432 = vmatpush1.msra.mxu0 0.0
    %433 = vmatprep.subr.mxu0 0.0
    %434 = vmatpush1.msra.mxu0 0.0
    %435 = vmatprep.subr.mxu0 0.0
    %436 = vmatpush1.msra.mxu0 0.0
    %437 = vmatprep.subr.mxu0 0.0
    %438 = vmatpush1.msra.mxu0 0.0
    %439 = vmatprep.subr.mxu0 0.0
    %440 = vmatpush1.msra.mxu0 0.0
    %441 = vmatprep.subr.mxu0 0.0
    %442 = vmatpush1.msra.mxu0 0.0
    %443 = vmatprep.subr.mxu0 0.0
    %444 = vmatpush1.msra.mxu0 0.0
    %445 = vmatprep.subr.mxu0 0.0
    %446 = vmatpush1.msra.mxu0 0.0
    %447 = vmatprep.subr.mxu0 0.0
    %448 = vmatpush1.msra.mxu0 0.0
    %449 = vmatprep.mubr.f32.mxu0 0.0
    %450 = vmatmul.mubr.f32.gmra.mrb[0].mxu0 %v383
    %v451 = vpop.f32.mrb[0].mxu0
    %v452 = vadd.f32 %v381, %v451
    %v453 = vpop.f32.mrb[0].mxu0
    %454 = vdwg.mxu0
    %v455 = vmax.f32 %v452, 0.0
    %457 = vset.pattern.permute.xlu0 0
    %458 = vperm.xlu0 %457, %v19
    %v459 = vpop.permute.xlu0 %458
    %v462 = vsel %vm139, %v20, 0
    %v465 = vsel %vm139, %v455, 0
    %467 = vmatprep.subr.mxu0 0.0
    %468 = vmatpush1.xpose.msra.mxu0 %v465
    %469 = vmatprep.subr.mxu0 0.0
    %470 = vmatpush1.xpose.msra.mxu0 0.0
    %471 = vmatprep.subr.mxu0 0.0
    %472 = vmatpush1.xpose.msra.mxu0 0.0
    %473 = vmatprep.subr.mxu0 0.0
    %474 = vmatpush1.xpose.msra.mxu0 0.0
    %475 = vmatprep.subr.mxu0 0.0
    %476 = vmatpush1.xpose.msra.mxu0 0.0
    %477 = vmatprep.subr.mxu0 0.0
    %478 = vmatpush1.xpose.msra.mxu0 0.0
    %479 = vmatprep.subr.mxu0 0.0
    %480 = vmatpush1.xpose.msra.mxu0 0.0
    %481 = vmatprep.subr.mxu0 0.0
    %482 = vmatpush1.xpose.msra.mxu0 0.0
    %483 = vmatprep.subr.mxu0 0.0
    %484 = vmatpush1.xpose.msra.mxu0 0.0
    %485 = vmatprep.subr.mxu0 0.0
    %486 = vmatpush1.xpose.msra.mxu0 0.0
    %487 = vmatprep.subr.mxu0 0.0
    %488 = vmatpush1.xpose.msra.mxu0 0.0
    %489 = vmatprep.subr.mxu0 0.0
    %490 = vmatpush1.xpose.msra.mxu0 0.0
    %491 = vmatprep.subr.mxu0 0.0
    %492 = vmatpush1.xpose.msra.mxu0 0.0
    %493 = vmatprep.subr.mxu0 0.0
    %494 = vmatpush1.xpose.msra.mxu0 0.0
    %495 = vmatprep.subr.mxu0 0.0
    %496 = vmatpush1.xpose.msra.mxu0 0.0
    %497 = vmatprep.subr.mxu0 0.0
    %498 = vmatpush1.xpose.msra.mxu0 0.0
    %499 = vmatprep.subr.mxu0 0.0
    %500 = vmatpush1.xpose.msra.mxu0 0.0
    %501 = vmatprep.subr.mxu0 0.0
    %502 = vmatpush1.xpose.msra.mxu0 0.0
    %503 = vmatprep.subr.mxu0 0.0
    %504 = vmatpush1.xpose.msra.mxu0 0.0
    %505 = vmatprep.subr.mxu0 0.0
    %506 = vmatpush1.xpose.msra.mxu0 0.0
    %507 = vmatprep.subr.mxu0 0.0
    %508 = vmatpush1.xpose.msra.mxu0 0.0
    %509 = vmatprep.subr.mxu0 0.0
    %510 = vmatpush1.xpose.msra.mxu0 0.0
    %511 = vmatprep.subr.mxu0 0.0
    %512 = vmatpush1.xpose.msra.mxu0 0.0
    %513 = vmatprep.subr.mxu0 0.0
    %514 = vmatpush1.xpose.msra.mxu0 0.0
    %515 = vmatprep.subr.mxu0 0.0
    %516 = vmatpush1.xpose.msra.mxu0 0.0
    %517 = vmatprep.subr.mxu0 0.0
    %518 = vmatpush1.xpose.msra.mxu0 0.0
    %519 = vmatprep.subr.mxu0 0.0
    %520 = vmatpush1.xpose.msra.mxu0 0.0
    %521 = vmatprep.subr.mxu0 0.0
    %522 = vmatpush1.xpose.msra.mxu0 0.0
    %523 = vmatprep.subr.mxu0 0.0
    %524 = vmatpush1.xpose.msra.mxu0 0.0
    %525 = vmatprep.subr.mxu0 0.0
    %526 = vmatpush1.xpose.msra.mxu0 0.0
    %527 = vmatprep.subr.mxu0 0.0
    %528 = vmatpush1.xpose.msra.mxu0 0.0
    %529 = vmatprep.subr.mxu0 0.0
    %530 = vmatpush1.xpose.msra.mxu0 0.0
    %531 = vmatprep.mubr.f32.mxu0 0.0
    %532 = vmatmul.mubr.f32.gmra.mrb[0].mxu0 %v462
    %v533 = vpop.f32.mrb[0].mxu0
    %v534 = vadd.f32 %v459, %v533
    %v535 = vpop.f32.mrb[0].mxu0
    %536 = vdwg.mxu0
    %vm537 = vcmask 57344
    %538 = vst.msk [vmem:[#allocation2] sm:$0x1] %vm537, %v534
    // Predicated region
    $region14: #{critic_forward.1} parent=1 // pred_check
      _
    $region15: #{critic_forward.1} parent=1 // pred_check_branch
      %540 = sbr.rel (0) target = $region17
    $region16: #{critic_forward.1} parent=1 // pred_region
      %s542 = ssub.s32 16, 16
      %543 = vsyncadd [#allocation3], %s542
      %s545 = sshll.u32 [#allocation2], 4
      %s546 = int_to_ptr.vmem [resolvable:$true] %s545
      %548 = dma.vmem_to_hbm [thread:$0]  %s546, 16, %s3, [#allocation3]
    $region17: #{critic_forward.1} parent=1 // pred_fallthru
      _
    // Predicated region
    $region18: #{critic_forward.1} parent=1 // pred_check
      _
    $region19: #{critic_forward.1} parent=1 // pred_check_branch
      %550 = sbr.rel (0) target = $region21
    $region20: #{critic_forward.1} parent=1 // pred_region
      %551 = dma.done [#allocation3], 16
    $region21: #{critic_forward.1} parent=1 // pred_fallthru
      _
    %552 = vsyncpa [#allocation3], 1

</llo_original>
